<compile_context>
chip_gen: v5e
topology: v5e:2x2
jax: 0.10.0
libtpu: 0.0.40
codegen_flags: <defaults>
</compile_context>

<pallas_src>
import jax
import jax.numpy as jnp
import numpy as np
from jax import lax
from jax.experimental import pallas as pl
from jax.experimental.pallas import tpu as pltpu

INP_DIM = 784
HIDDEN = 128


def _round_up(n, m):
    return ((n + m - 1) // m) * m


def _disc_kernel(x_ref, w1_ref, b1_ref, w2_ref, b2_ref, o_ref):
    # In-kernel bf16 cast of the f32 input tile (VPU has slack; saves the
    # external HBM cast pass over x).
    x_bf = x_ref[...].astype(jnp.bfloat16)
    # fc1 on the MXU: [TB, 784] bf16 @ [784, 128] bf16 -> f32 accumulate.
    h = jnp.dot(x_bf, w1_ref[...], preferred_element_type=jnp.float32)
    h = h + b1_ref[...]
    # LeakyReLU(0.2) in f32 on the VPU.
    h = jnp.where(h > 0, h, 0.2 * h)
    # fc2 (out_features == 1): contract the hidden dim of w2 (1,128) against the
    # hidden dim of h (TB,128) -> logits come out lane-dense as (1, TB).
    # MXU is idle in this HBM-bound kernel, so this costs nothing and avoids a
    # separate column->row relayout for the lane-dense store.
    logit = lax.dot_general(
        w2_ref[...], h, (((1,), (1,)), ((), ())),
        preferred_element_type=jnp.float32) + b2_ref[0]            # (1, TB)
    # Sigmoid: exp on the EUP; divide via approximate reciprocal (EUP slot).
    sig = pl.reciprocal(1.0 + jnp.exp(-logit), approx=True)
    o_ref[...] = sig.reshape(o_ref.shape).astype(o_ref.dtype)      # (1, 1, TB)


def discriminator_forward(x, w1, b1, w2, b2, *, block_b=1024):
    """x: [B, ...] with prod(...) == 784. Returns [B, 1] float32.

    w1: [784, 128], b1: [1, 128] (or [128]), w2: [128, 1] (or [128]), b2: scalar-ish.
    """
    B = x.shape[0]
    x2d = x.reshape(B, INP_DIM)   # fed to the kernel in its original dtype

    # Small, grid-resident operands.
    w1_bf = w1.reshape(INP_DIM, HIDDEN).astype(jnp.bfloat16)
    b1_f = b1.reshape(1, HIDDEN).astype(jnp.float32)
    w2_row = w2.reshape(1, HIDDEN).astype(jnp.float32)   # fc2 weights as a row
    b2_s = b2.reshape(1).astype(jnp.float32)              # scalar -> SMEM

    # Tiny-batch guard: the (8, ...) sublane block must not exceed the array dim.
    b_eff = B
    if b_eff < 8:
        x2d = jnp.pad(x2d, ((0, 8 - b_eff), (0, 0)))
        b_eff = 8

    # Batch tile: split B as evenly as possible (<= block_b), multiple of 8,
    # and keep >=2 grid steps when B allows (v7x megacore + pipelining).
    n_steps = pl.cdiv(b_eff, block_b)
    if n_steps == 1 and b_eff > 8:
        n_steps = 2
    tb = _round_up(pl.cdiv(b_eff, n_steps), 8)
    grid_b = pl.cdiv(b_eff, tb)

    out_tiles = pl.pallas_call(
        _disc_kernel,
        out_shape=jax.ShapeDtypeStruct((grid_b, 1, tb), jnp.float32),
        grid_spec=pltpu.PrefetchScalarGridSpec(
            num_scalar_prefetch=0,
            grid=(grid_b,),
            in_specs=[
                pl.BlockSpec((tb, INP_DIM), lambda i: (i, 0)),        # x tile (f32)
                pl.BlockSpec((INP_DIM, HIDDEN), lambda i: (0, 0)),    # w1 resident (bf16)
                pl.BlockSpec((1, HIDDEN), lambda i: (0, 0)),          # b1 resident (f32)
                pl.BlockSpec((1, HIDDEN), lambda i: (0, 0)),          # w2 row resident (f32)
                pl.BlockSpec(memory_space=pltpu.MemorySpace.SMEM),    # b2 scalar (f32)
            ],
            out_specs=pl.BlockSpec((1, 1, tb), lambda i: (i, 0, 0)),  # lane-dense
        ),
        compiler_params=pltpu.CompilerParams(
            dimension_semantics=("parallel",),
        ),
    )(x2d, w1_bf, b1_f, w2_row, b2_s)

    # (num_tiles, 1, TB) -> (num_tiles*TB, 1); drop partial-tile / padded rows.
    return out_tiles.reshape(grid_b * tb, 1)[:B]


def init_params(key):
    """Deterministic init mimicking PyTorch nn.Linear defaults:
    U(-1/sqrt(fan_in), 1/sqrt(fan_in)) for both weights and biases."""
    k1, k2, k3, k4 = jax.random.split(key, 4)
    bound1 = 1.0 / np.sqrt(INP_DIM)
    bound2 = 1.0 / np.sqrt(HIDDEN)
    # Stored transposed vs. PyTorch: [in_features, out_features]
    w1 = jax.random.uniform(k1, (INP_DIM, HIDDEN), jnp.float32, -bound1, bound1)
    b1 = jax.random.uniform(k2, (1, HIDDEN), jnp.float32, -bound1, bound1)
    w2 = jax.random.uniform(k3, (HIDDEN, 1), jnp.float32, -bound2, bound2)
    b2 = jax.random.uniform(k4, (1, 1), jnp.float32, -bound2, bound2)
    return w1, b1, w2, b2


def _reference_forward(x, w1, b1, w2, b2):
    """Pure-JAX reference with the same bf16-input / f32-accumulate recipe."""
    B = x.shape[0]
    x2d = x.reshape(B, INP_DIM).astype(jnp.bfloat16)
    h = jnp.dot(x2d, w1.astype(jnp.bfloat16), preferred_element_type=jnp.float32)
    h = h + b1.reshape(1, HIDDEN).astype(jnp.float32)
    h = jnp.where(h > 0, h, 0.2 * h)
    out = h @ w2.reshape(HIDDEN, 1).astype(jnp.float32) + b2.reshape(1, 1)
    return 1.0 / (1.0 + jnp.exp(-out))


if __name__ == "__main__":
    key = jax.random.PRNGKey(0)
    kx, kp = jax.random.split(key)

    w1, b1, w2, b2 = init_params(kp)

    # Small batch of MNIST-shaped inputs (NCHW), flattened to 784 by forward.
    B = 8
    x = jax.random.normal(kx, (B, 1, 28, 28), dtype=jnp.float32)
    out = jax.block_until_ready(discriminator_forward(x, w1, b1, w2, b2))
    ref = _reference_forward(x, w1, b1, w2, b2)
    np.testing.assert_allclose(np.asarray(out), np.asarray(ref),
                               rtol=5e-3, atol=5e-3)
    assert out.shape == (B, 1)

    # Exercise the multi-tile path with a partial last block (B not a multiple
    # of the tile): even split -> 2 tiles of 152 rows, 4 garbage rows dropped.
    B2 = 300
    x2 = jax.random.normal(jax.random.PRNGKey(1), (B2, 1, 28, 28),
                           dtype=jnp.float32)
    out2 = jax.block_until_ready(discriminator_forward(x2, w1, b1, w2, b2))
    ref2 = _reference_forward(x2, w1, b1, w2, b2)
    np.testing.assert_allclose(np.asarray(out2), np.asarray(ref2),
                               rtol=5e-3, atol=5e-3)
    assert out2.shape == (B2, 1)

    print("KERNEL_OK")
</pallas_src>

<mosaic_0001>
module attributes {stable_mosaic.version = 11 : i64} {
  func.func @_disc_kernel(%arg0: i32, %arg1: memref<8x784xf32, #tpu.memory_space<vmem>>, %arg2: memref<784x128xbf16, #tpu.memory_space<vmem>>, %arg3: memref<1x128xf32, #tpu.memory_space<vmem>>, %arg4: memref<1x128xf32, #tpu.memory_space<vmem>>, %arg5: memref<1xf32, #tpu.memory_space<smem>>, %arg6: memref<1x1x8xf32, #tpu.memory_space<vmem>>) attributes {dimension_semantics = [#tpu.dimension_semantics<parallel>], iteration_bounds = array<i64: 1>, scalar_prefetch = 0 : i64, scratch_operands = 0 : i64, tpu.core_type = #tpu.core_type<tc>, window_params = [{transform_indices = @transform_0, window_bounds = array<i64: 8, 784>}, {pipeline_mode = #tpu.pipeline_mode<synchronous>, transform_indices = @transform_1, window_bounds = array<i64: 784, 128>}, {pipeline_mode = #tpu.pipeline_mode<synchronous>, transform_indices = @transform_2, window_bounds = array<i64: 1, 128>}, {pipeline_mode = #tpu.pipeline_mode<synchronous>, transform_indices = @transform_3, window_bounds = array<i64: 1, 128>}, {transform_indices = @transform_4, window_bounds = array<i64: 1>}, {transform_indices = @transform_5, window_bounds = array<i64: 1, 1, 8>}]} {
    %c0 = arith.constant 0 : index
    %c0_0 = arith.constant 0 : index
    %0 = vector.load %arg1[%c0, %c0_0] : memref<8x784xf32, #tpu.memory_space<vmem>>, vector<8x784xf32>
    %1 = arith.truncf %0 : vector<8x784xf32> to vector<8x784xbf16>
    %c0_1 = arith.constant 0 : index
    %c0_2 = arith.constant 0 : index
    %2 = vector.load %arg2[%c0_1, %c0_2] : memref<784x128xbf16, #tpu.memory_space<vmem>>, vector<784x128xbf16>
    %cst = arith.constant dense<0.000000e+00> : vector<8x128xf32>
    %3 = tpu.matmul %1, %2, %cst {dimension_numbers = #tpu.dot_dimension_numbers<[1], [0], [0], [1], [0, 0, 1, 1], [], []>} : vector<8x784xbf16>, vector<784x128xbf16>, vector<8x128xf32> -> vector<8x128xf32>
    %c0_3 = arith.constant 0 : index
    %c0_4 = arith.constant 0 : index
    %4 = vector.load %arg3[%c0_3, %c0_4] : memref<1x128xf32, #tpu.memory_space<vmem>>, vector<1x128xf32>
    %5 = vector.broadcast %4 : vector<1x128xf32> to vector<8x128xf32>
    %6 = arith.addf %3, %5 : vector<8x128xf32>
    %cst_5 = arith.constant 0.000000e+00 : f32
    %7 = vector.broadcast %cst_5 : f32 to vector<8x128xf32>
    %8 = arith.cmpf ogt, %6, %7 : vector<8x128xf32>
    %cst_6 = arith.constant 2.000000e-01 : f32
    %9 = vector.broadcast %cst_6 : f32 to vector<8x128xf32>
    %10 = arith.mulf %9, %6 : vector<8x128xf32>
    %11 = arith.select %8, %6, %10 : vector<8x128xi1>, vector<8x128xf32>
    %c0_7 = arith.constant 0 : index
    %c0_8 = arith.constant 0 : index
    %12 = vector.load %arg4[%c0_7, %c0_8] : memref<1x128xf32, #tpu.memory_space<vmem>>, vector<1x128xf32>
    %cst_9 = arith.constant dense<0.000000e+00> : vector<1x8xf32>
    %13 = tpu.matmul %12, %11, %cst_9 {dimension_numbers = #tpu.dot_dimension_numbers<[1], [1], [0], [0], [0, 0, 1, 0], [], []>} : vector<1x128xf32>, vector<8x128xf32>, vector<1x8xf32> -> vector<1x8xf32>
    %c0_10 = arith.constant 0 : index
    %14 = memref.load %arg5[%c0_10] : memref<1xf32, #tpu.memory_space<smem>>
    %15 = vector.broadcast %14 : f32 to vector<1x8xf32>
    %16 = arith.addf %13, %15 : vector<1x8xf32>
    %cst_11 = arith.constant 0.000000e+00 : f32
    %17 = vector.broadcast %cst_11 : f32 to vector<1x8xf32>
    %18 = arith.subf %17, %16 : vector<1x8xf32>
    %19 = math.exp %18 : vector<1x8xf32>
    %cst_12 = arith.constant 1.000000e+00 : f32
    %20 = vector.broadcast %cst_12 : f32 to vector<1x8xf32>
    %21 = arith.addf %20, %19 : vector<1x8xf32>
    %22 = tpu.reciprocal %21 {approx = true} : vector<1x8xf32> -> vector<1x8xf32>
    %23 = vector.shape_cast %22 : vector<1x8xf32> to vector<1x1x8xf32>
    %c0_13 = arith.constant 0 : index
    %c0_14 = arith.constant 0 : index
    %c0_15 = arith.constant 0 : index
    %24 = vector.load %arg6[%c0_13, %c0_14, %c0_15] : memref<1x1x8xf32, #tpu.memory_space<vmem>>, vector<1x1x8xf32>
    tpu.vector_store %arg6[%c0_13, %c0_14, %c0_15], %23 {strides = array<i32>} : memref<1x1x8xf32, #tpu.memory_space<vmem>>, vector<1x1x8xf32>,
    return
  }
  func.func @transform_0(%arg0: i32) -> (i32, i32) {
    %c0_i32 = arith.constant 0 : i32
    %c0_i32_0 = arith.constant 0 : i32
    return %arg0, %c0_i32 : i32, i32
  }
  func.func @transform_1(%arg0: i32) -> (i32, i32) {
    %c0_i32 = arith.constant 0 : i32
    %c0_i32_0 = arith.constant 0 : i32
    %c0_i32_1 = arith.constant 0 : i32
    return %c0_i32, %c0_i32_0 : i32, i32
  }
  func.func @transform_2(%arg0: i32) -> (i32, i32) {
    %c0_i32 = arith.constant 0 : i32
    %c0_i32_0 = arith.constant 0 : i32
    %c0_i32_1 = arith.constant 0 : i32
    return %c0_i32, %c0_i32_0 : i32, i32
  }
  func.func @transform_3(%arg0: i32) -> (i32, i32) {
    %c0_i32 = arith.constant 0 : i32
    %c0_i32_0 = arith.constant 0 : i32
    %c0_i32_1 = arith.constant 0 : i32
    return %c0_i32, %c0_i32_0 : i32, i32
  }
  func.func @transform_4(%arg0: i32) -> i32 {
    %c0_i32 = arith.constant 0 : i32
    %c0_i32_0 = arith.constant 0 : i32
    return %c0_i32 : i32
  }
  func.func @transform_5(%arg0: i32) -> (i32, i32, i32) {
    %c0_i32 = arith.constant 0 : i32
    %c0_i32_0 = arith.constant 0 : i32
    %c0_i32_1 = arith.constant 0 : i32
    return %arg0, %c0_i32, %c0_i32_0 : i32, i32, i32
  }
}

</mosaic_0001>

<llo_original>
// kernel: tpu_custom_call.1
$region0: #{tpu_custom_call.1}
  #allocation0 [shape = 'u32[]', space=smem, size = 0x4, offset = 0x4, fixed_abs, tag = 'smem constant byte address 0x4 - core index']
  #allocation1 [shape = 'u32[72,128]{1,0:T(1,128)}', space=vmem, size = 0x9000, scoped, tag = 'internal scratch']
  #allocation2 [shape = 'f32[1]{0:T(128)S(6)}', space=smem, size = 0x200, scoped, tag = 'scoped memory for tpu_custom_call.1']
  %s0 = inlined_call_operand.hbm [shape: f32[8,784], index: 0, kind: input, shape index: {}]
  %s1 = inlined_call_operand.hbm [shape: bf16[784,128], index: 1, kind: input, shape index: {}]
  %s2 = inlined_call_operand.vmem [shape: f32[1,128], index: 2, kind: input, shape index: {}]
  %s3 = inlined_call_operand.vmem [shape: f32[1,128], index: 3, kind: input, shape index: {}]
  %s4 = inlined_call_operand.<no memory space> [shape: f32[1], index: 4, kind: input, shape index: {}]
  %s5 = inlined_call_operand.hbm [shape: f32[1,1,8], index: 5, kind: output, shape index: {}]
  %s6 = sld [smem:[#allocation0]]
  $region38: #{tpu_custom_call.1} parent=0
    _
  %s8 = ssub.s32 1, %s6
  %s9 = scalar_select 0, %s8, %s6
  %10 = sst [smem:[#allocation2]] %s4
  $region1: #{tpu_custom_call.1} parent=0
    #allocation3 [shape = 'u8[28672]{0}', space=vmem, size = 0x7000, scoped, tag = 'input window, operand 0, single buffered']
    #allocation4 [shape = 's32[1]{0}', space=sflag, size = 0x4, scoped, tag = 'scoped memory for tpu_custom_call.1']
    #allocation5 [shape = 's32[1]{0}', space=sflag, size = 0x4, scoped, tag = 'scoped memory for tpu_custom_call.1']
    #allocation6 [shape = 'u8[200704]{0}', space=vmem, size = 0x31000, scoped, tag = 'input window, operand 1, single buffered']
    #allocation7 [shape = 's32[1]{0}', space=sflag, size = 0x4, scoped, tag = 'scoped memory for tpu_custom_call.1']
    #allocation8 [shape = 'u8[512]{0}', space=vmem, size = 0x400, scoped, tag = 'output window, operand 0, single buffered']
    %11 = vsyncpa [#allocation4], 0
    %12 = vsyncpa [#allocation7], 0
    %13 = vsyncpa [#allocation5], 0
    // Predicated region
    $region2: #{tpu_custom_call.1} parent=1 // pred_check
      _
    $region3: #{tpu_custom_call.1} parent=1 // pred_check_branch
      %15 = sbr.rel (0) target = $region5
    $region4: #{tpu_custom_call.1} parent=1 // pred_region
      %17 = vsyncadd [#allocation4], 0
      %s19 = sshll.u32 %s0, 4
      %s20 = int_to_ptr.hbm [resolvable:$true] %s19
      %s21 = sshll.u32 [#allocation3], 4
      %s22 = int_to_ptr.vmem [resolvable:$true] %s21
      %24 = dma.hbm_to_vmem [thread:$0]  %s20, 896, %s22, [#allocation4]
    $region5: #{tpu_custom_call.1} parent=1 // pred_fallthru
      _
    // Predicated region
    $region6: #{tpu_custom_call.1} parent=1 // pred_check
      _
    $region7: #{tpu_custom_call.1} parent=1 // pred_check_branch
      %26 = sbr.rel (0) target = $region9
    $region8: #{tpu_custom_call.1} parent=1 // pred_region
      %28 = vsyncadd [#allocation7], 0
      %s29 = sshll.u32 %s1, 4
      %s30 = int_to_ptr.hbm [resolvable:$true] %s29
      %s31 = sshll.u32 [#allocation6], 4
      %s32 = int_to_ptr.vmem [resolvable:$true] %s31
      %37 = dma.hbm_to_vmem [thread:$0]  %s30, 6272, %s32, [#allocation7], 64, 64, 4
    $region9: #{tpu_custom_call.1} parent=1 // pred_fallthru
      _
    // Predicated region
    $region10: #{tpu_custom_call.1} parent=1 // pred_check
      _
    $region11: #{tpu_custom_call.1} parent=1 // pred_check_branch
      %39 = sbr.rel (0) target = $region13
    $region12: #{tpu_custom_call.1} parent=1 // pred_region
      _
    $region13: #{tpu_custom_call.1} parent=1 // pred_fallthru
      _
    // Predicated region
    $region14: #{tpu_custom_call.1} parent=1 // pred_check
      _
    $region15: #{tpu_custom_call.1} parent=1 // pred_check_branch
      %41 = sbr.rel (0) target = $region17
    $region16: #{tpu_custom_call.1} parent=1 // pred_region
      _
    $region17: #{tpu_custom_call.1} parent=1 // pred_fallthru
      _
    // Predicated region
    $region18: #{tpu_custom_call.1} parent=1 // pred_check
      _
    $region19: #{tpu_custom_call.1} parent=1 // pred_check_branch
      %43 = sbr.rel (0) target = $region21
    $region20: #{tpu_custom_call.1} parent=1 // pred_region
      _
    $region21: #{tpu_custom_call.1} parent=1 // pred_fallthru
      _
    // Predicated region
    $region22: #{tpu_custom_call.1} parent=1 // pred_check
      _
    $region23: #{tpu_custom_call.1} parent=1 // pred_check_branch
      %45 = sbr.rel (0) target = $region25
    $region24: #{tpu_custom_call.1} parent=1 // pred_region
      %47 = dma.done [#allocation4], 896
    $region25: #{tpu_custom_call.1} parent=1 // pred_fallthru
      _
    // Predicated region
    $region26: #{tpu_custom_call.1} parent=1 // pred_check
      _
    $region27: #{tpu_custom_call.1} parent=1 // pred_check_branch
      %49 = sbr.rel (0) target = $region29
    $region28: #{tpu_custom_call.1} parent=1 // pred_region
      %51 = dma.done [#allocation7], 6272
    $region29: #{tpu_custom_call.1} parent=1 // pred_fallthru
      _
    %v53 = vld [vmem:[#allocation3] sm:$0xff]
    %v54 = vld [vmem:[#allocation3 + $0x8] sm:$0xff]
    %v55 = vld [vmem:[#allocation3 + $0x10] sm:$0xff]
    %v56 = vld [vmem:[#allocation3 + $0x18] sm:$0xff]
    %v57 = vld [vmem:[#allocation3 + $0x20] sm:$0xff]
    %v58 = vld [vmem:[#allocation3 + $0x28] sm:$0xff]
    %v59 = vld [vmem:[#allocation3 + $0x30] sm:$0xff]
    %v60 = vpack.c.bf16 %v53, %v53
    %v61 = vpack.c.bf16 %v54, %v54
    %v62 = vpack.c.bf16 %v55, %v55
    %v63 = vpack.c.bf16 %v56, %v56
    %v64 = vpack.c.bf16 %v57, %v57
    %v65 = vpack.c.bf16 %v58, %v58
    %v66 = vpack.c.bf16 %v59, %v59
    %v67 = vld [vmem:[#allocation6] sm:$0xf]
    %v68 = vld [vmem:[#allocation6 + $0x4] sm:$0xf]
    %v69 = vld [vmem:[#allocation6 + $0x8] sm:$0xf]
    %v70 = vld [vmem:[#allocation6 + $0xc] sm:$0xf]
    %v71 = vld [vmem:[#allocation6 + $0x10] sm:$0xf]
    %v72 = vld [vmem:[#allocation6 + $0x14] sm:$0xf]
    %v73 = vld [vmem:[#allocation6 + $0x18] sm:$0xf]
    %v74 = vld [vmem:[#allocation6 + $0x1c] sm:$0xf]
    %v75 = vld [vmem:[#allocation6 + $0x20] sm:$0xf]
    %v76 = vld [vmem:[#allocation6 + $0x24] sm:$0xf]
    %v77 = vld [vmem:[#allocation6 + $0x28] sm:$0xf]
    %v78 = vld [vmem:[#allocation6 + $0x2c] sm:$0xf]
    %v79 = vld [vmem:[#allocation6 + $0x30] sm:$0xf]
    %v80 = vld [vmem:[#allocation6 + $0x34] sm:$0xf]
    %v81 = vld [vmem:[#allocation6 + $0x38] sm:$0xf]
    %v82 = vld [vmem:[#allocation6 + $0x3c] sm:$0xf]
    %v83 = vld [vmem:[#allocation6 + $0x40] sm:$0xf]
    %v84 = vld [vmem:[#allocation6 + $0x44] sm:$0xf]
    %v85 = vld [vmem:[#allocation6 + $0x48] sm:$0xf]
    %v86 = vld [vmem:[#allocation6 + $0x4c] sm:$0xf]
    %v87 = vld [vmem:[#allocation6 + $0x50] sm:$0xf]
    %v88 = vld [vmem:[#allocation6 + $0x54] sm:$0xf]
    %v89 = vld [vmem:[#allocation6 + $0x58] sm:$0xf]
    %v90 = vld [vmem:[#allocation6 + $0x5c] sm:$0xf]
    %v91 = vld [vmem:[#allocation6 + $0x60] sm:$0xf]
    %v92 = vld [vmem:[#allocation6 + $0x64] sm:$0xf]
    %v93 = vld [vmem:[#allocation6 + $0x68] sm:$0xf]
    %v94 = vld [vmem:[#allocation6 + $0x6c] sm:$0xf]
    %v95 = vld [vmem:[#allocation6 + $0x70] sm:$0xf]
    %v96 = vld [vmem:[#allocation6 + $0x74] sm:$0xf]
    %v97 = vld [vmem:[#allocation6 + $0x78] sm:$0xf]
    %v98 = vld [vmem:[#allocation6 + $0x7c] sm:$0xf]
    %v99 = vld [vmem:[#allocation6 + $0x80] sm:$0xf]
    %v100 = vld [vmem:[#allocation6 + $0x84] sm:$0xf]
    %v101 = vld [vmem:[#allocation6 + $0x88] sm:$0xf]
    %v102 = vld [vmem:[#allocation6 + $0x8c] sm:$0xf]
    %v103 = vld [vmem:[#allocation6 + $0x90] sm:$0xf]
    %v104 = vld [vmem:[#allocation6 + $0x94] sm:$0xf]
    %v105 = vld [vmem:[#allocation6 + $0x98] sm:$0xf]
    %v106 = vld [vmem:[#allocation6 + $0x9c] sm:$0xf]
    %v107 = vld [vmem:[#allocation6 + $0xa0] sm:$0xf]
    %v108 = vld [vmem:[#allocation6 + $0xa4] sm:$0xf]
    %v109 = vld [vmem:[#allocation6 + $0xa8] sm:$0xf]
    %v110 = vld [vmem:[#allocation6 + $0xac] sm:$0xf]
    %v111 = vld [vmem:[#allocation6 + $0xb0] sm:$0xf]
    %v112 = vld [vmem:[#allocation6 + $0xb4] sm:$0xf]
    %v113 = vld [vmem:[#allocation6 + $0xb8] sm:$0xf]
    %v114 = vld [vmem:[#allocation6 + $0xbc] sm:$0xf]
    %v115 = vld [vmem:[#allocation6 + $0xc0] sm:$0xf]
    %v116 = vld [vmem:[#allocation6 + $0xc4] sm:$0xf]
    %v117 = vld [vmem:[#allocation6 + $0xc8] sm:$0xf]
    %v118 = vld [vmem:[#allocation6 + $0xcc] sm:$0xf]
    %v119 = vld [vmem:[#allocation6 + $0xd0] sm:$0xf]
    %v120 = vld [vmem:[#allocation6 + $0xd4] sm:$0xf]
    %v121 = vld [vmem:[#allocation6 + $0xd8] sm:$0xf]
    %v122 = vld [vmem:[#allocation6 + $0xdc] sm:$0xf]
    %v123 = vld [vmem:[#allocation6 + $0xe0] sm:$0xf]
    %v124 = vld [vmem:[#allocation6 + $0xe4] sm:$0xf]
    %v125 = vld [vmem:[#allocation6 + $0xe8] sm:$0xf]
    %v126 = vld [vmem:[#allocation6 + $0xec] sm:$0xf]
    %v127 = vld [vmem:[#allocation6 + $0xf0] sm:$0xf]
    %v128 = vld [vmem:[#allocation6 + $0xf4] sm:$0xf]
    %v129 = vld [vmem:[#allocation6 + $0xf8] sm:$0xf]
    %v130 = vld [vmem:[#allocation6 + $0xfc] sm:$0xf]
    %v131 = vld [vmem:[#allocation6 + $0x100] sm:$0xf]
    %v132 = vld [vmem:[#allocation6 + $0x104] sm:$0xf]
    %v133 = vld [vmem:[#allocation6 + $0x108] sm:$0xf]
    %v134 = vld [vmem:[#allocation6 + $0x10c] sm:$0xf]
    %v135 = vld [vmem:[#allocation6 + $0x110] sm:$0xf]
    %v136 = vld [vmem:[#allocation6 + $0x114] sm:$0xf]
    %v137 = vld [vmem:[#allocation6 + $0x118] sm:$0xf]
    %v138 = vld [vmem:[#allocation6 + $0x11c] sm:$0xf]
    %v139 = vld [vmem:[#allocation6 + $0x120] sm:$0xf]
    %v140 = vld [vmem:[#allocation6 + $0x124] sm:$0xf]
    %v141 = vld [vmem:[#allocation6 + $0x128] sm:$0xf]
    %v142 = vld [vmem:[#allocation6 + $0x12c] sm:$0xf]
    %v143 = vld [vmem:[#allocation6 + $0x130] sm:$0xf]
    %v144 = vld [vmem:[#allocation6 + $0x134] sm:$0xf]
    %v145 = vld [vmem:[#allocation6 + $0x138] sm:$0xf]
    %v146 = vld [vmem:[#allocation6 + $0x13c] sm:$0xf]
    %v147 = vld [vmem:[#allocation6 + $0x140] sm:$0xf]
    %v148 = vld [vmem:[#allocation6 + $0x144] sm:$0xf]
    %v149 = vld [vmem:[#allocation6 + $0x148] sm:$0xf]
    %v150 = vld [vmem:[#allocation6 + $0x14c] sm:$0xf]
    %v151 = vld [vmem:[#allocation6 + $0x150] sm:$0xf]
    %v152 = vld [vmem:[#allocation6 + $0x154] sm:$0xf]
    %v153 = vld [vmem:[#allocation6 + $0x158] sm:$0xf]
    %v154 = vld [vmem:[#allocation6 + $0x15c] sm:$0xf]
    %v155 = vld [vmem:[#allocation6 + $0x160] sm:$0xf]
    %v156 = vld [vmem:[#allocation6 + $0x164] sm:$0xf]
    %v157 = vld [vmem:[#allocation6 + $0x168] sm:$0xf]
    %v158 = vld [vmem:[#allocation6 + $0x16c] sm:$0xf]
    %v159 = vld [vmem:[#allocation6 + $0x170] sm:$0xf]
    %v160 = vld [vmem:[#allocation6 + $0x174] sm:$0xf]
    %v161 = vld [vmem:[#allocation6 + $0x178] sm:$0xf]
    %v162 = vld [vmem:[#allocation6 + $0x17c] sm:$0xf]
    %v163 = vld [vmem:[#allocation6 + $0x180] sm:$0xf]
    %v164 = vld [vmem:[#allocation6 + $0x184] sm:$0xf]
    %v165 = vld [vmem:[%s2] sm:$0x1]
    %v167 = vperm.slane %v165, 0
    %v267 = vunpack.c.l.b16 %v67
    %v268 = vunpack.c.l.b16 %v68
    %v269 = vunpack.c.l.b16 %v69
    %v270 = vunpack.c.l.b16 %v70
    %v271 = vunpack.c.l.b16 %v71
    %v272 = vunpack.c.l.b16 %v72
    %v273 = vunpack.c.l.b16 %v73
    %v274 = vunpack.c.l.b16 %v74
    %v275 = vunpack.c.l.b16 %v75
    %v276 = vunpack.c.l.b16 %v76
    %v277 = vunpack.c.l.b16 %v77
    %v278 = vunpack.c.l.b16 %v78
    %v279 = vunpack.c.l.b16 %v79
    %v280 = vunpack.c.l.b16 %v80
    %v281 = vunpack.c.l.b16 %v81
    %v282 = vunpack.c.l.b16 %v82
    %v283 = vunpack.c.l.b16 %v83
    %v284 = vunpack.c.l.b16 %v84
    %v285 = vunpack.c.l.b16 %v85
    %v286 = vunpack.c.l.b16 %v86
    %v287 = vunpack.c.l.b16 %v87
    %v288 = vunpack.c.l.b16 %v88
    %v289 = vunpack.c.l.b16 %v89
    %v290 = vunpack.c.l.b16 %v90
    %v291 = vunpack.c.l.b16 %v91
    %v292 = vunpack.c.l.b16 %v92
    %v293 = vunpack.c.l.b16 %v93
    %v294 = vunpack.c.l.b16 %v94
    %v295 = vunpack.c.l.b16 %v95
    %v296 = vunpack.c.l.b16 %v96
    %v297 = vunpack.c.l.b16 %v97
    %v298 = vunpack.c.l.b16 %v98
    %v299 = vunpack.c.l.b16 %v99
    %v300 = vunpack.c.l.b16 %v100
    %v301 = vunpack.c.l.b16 %v101
    %v302 = vunpack.c.l.b16 %v102
    %v303 = vunpack.c.l.b16 %v103
    %v304 = vunpack.c.l.b16 %v104
    %v305 = vunpack.c.l.b16 %v105
    %v306 = vunpack.c.l.b16 %v106
    %v307 = vunpack.c.l.b16 %v107
    %v308 = vunpack.c.l.b16 %v108
    %v309 = vunpack.c.l.b16 %v109
    %v310 = vunpack.c.l.b16 %v110
    %v311 = vunpack.c.l.b16 %v111
    %v312 = vunpack.c.l.b16 %v112
    %v313 = vunpack.c.l.b16 %v113
    %v314 = vunpack.c.l.b16 %v114
    %v315 = vunpack.c.l.b16 %v115
    %v316 = vunpack.c.l.b16 %v116
    %v317 = vunpack.c.l.b16 %v117
    %v318 = vunpack.c.l.b16 %v118
    %v319 = vunpack.c.l.b16 %v119
    %v320 = vunpack.c.l.b16 %v120
    %v321 = vunpack.c.l.b16 %v121
    %v322 = vunpack.c.l.b16 %v122
    %v323 = vunpack.c.l.b16 %v123
    %v324 = vunpack.c.l.b16 %v124
    %v325 = vunpack.c.l.b16 %v125
    %v326 = vunpack.c.l.b16 %v126
    %v327 = vunpack.c.l.b16 %v127
    %v328 = vunpack.c.l.b16 %v128
    %v329 = vunpack.c.l.b16 %v129
    %v330 = vunpack.c.l.b16 %v130
    %v331 = vunpack.c.l.b16 %v131
    %v332 = vunpack.c.l.b16 %v132
    %v333 = vunpack.c.l.b16 %v133
    %v334 = vunpack.c.l.b16 %v134
    %v335 = vunpack.c.l.b16 %v135
    %v336 = vunpack.c.l.b16 %v136
    %v337 = vunpack.c.l.b16 %v137
    %v338 = vunpack.c.l.b16 %v138
    %v339 = vunpack.c.l.b16 %v139
    %v340 = vunpack.c.l.b16 %v140
    %v341 = vunpack.c.l.b16 %v141
    %v342 = vunpack.c.l.b16 %v142
    %v343 = vunpack.c.l.b16 %v143
    %v344 = vunpack.c.l.b16 %v144
    %v345 = vunpack.c.l.b16 %v145
    %v346 = vunpack.c.l.b16 %v146
    %v347 = vunpack.c.l.b16 %v147
    %v348 = vunpack.c.l.b16 %v148
    %v349 = vunpack.c.l.b16 %v149
    %v350 = vunpack.c.l.b16 %v150
    %v351 = vunpack.c.l.b16 %v151
    %v352 = vunpack.c.l.b16 %v152
    %v353 = vunpack.c.l.b16 %v153
    %v354 = vunpack.c.l.b16 %v154
    %v355 = vunpack.c.l.b16 %v155
    %v356 = vunpack.c.l.b16 %v156
    %v357 = vunpack.c.l.b16 %v157
    %v358 = vunpack.c.l.b16 %v158
    %v359 = vunpack.c.l.b16 %v159
    %v360 = vunpack.c.l.b16 %v160
    %v361 = vunpack.c.l.b16 %v161
    %v362 = vunpack.c.l.b16 %v162
    %v363 = vunpack.c.l.b16 %v163
    %v364 = vunpack.c.l.b16 %v164
    %v365 = vpack.c.b16 %v268, %v267
    %v366 = vpack.c.b16 %v270, %v269
    %v367 = vpack.c.b16 %v272, %v271
    %v368 = vpack.c.b16 %v274, %v273
    %v369 = vpack.c.b16 %v276, %v275
    %v370 = vpack.c.b16 %v278, %v277
    %v371 = vpack.c.b16 %v280, %v279
    %v372 = vpack.c.b16 %v282, %v281
    %v373 = vpack.c.b16 %v284, %v283
    %v374 = vpack.c.b16 %v286, %v285
    %v375 = vpack.c.b16 %v288, %v287
    %v376 = vpack.c.b16 %v290, %v289
    %v377 = vpack.c.b16 %v292, %v291
    %v378 = vpack.c.b16 %v294, %v293
    %v379 = vpack.c.b16 %v296, %v295
    %v380 = vpack.c.b16 %v298, %v297
    %v381 = vpack.c.b16 %v300, %v299
    %v382 = vpack.c.b16 %v302, %v301
    %v383 = vpack.c.b16 %v304, %v303
    %v384 = vpack.c.b16 %v306, %v305
    %v385 = vpack.c.b16 %v308, %v307
    %v386 = vpack.c.b16 %v310, %v309
    %v387 = vpack.c.b16 %v312, %v311
    %v388 = vpack.c.b16 %v314, %v313
    %v389 = vpack.c.b16 %v316, %v315
    %v390 = vpack.c.b16 %v318, %v317
    %v391 = vpack.c.b16 %v320, %v319
    %v392 = vpack.c.b16 %v322, %v321
    %v393 = vpack.c.b16 %v324, %v323
    %v394 = vpack.c.b16 %v326, %v325
    %v395 = vpack.c.b16 %v328, %v327
    %v396 = vpack.c.b16 %v330, %v329
    %v397 = vpack.c.b16 %v332, %v331
    %v398 = vpack.c.b16 %v334, %v333
    %v399 = vpack.c.b16 %v336, %v335
    %v400 = vpack.c.b16 %v338, %v337
    %v401 = vpack.c.b16 %v340, %v339
    %v402 = vpack.c.b16 %v342, %v341
    %v403 = vpack.c.b16 %v344, %v343
    %v404 = vpack.c.b16 %v346, %v345
    %v405 = vpack.c.b16 %v348, %v347
    %v406 = vpack.c.b16 %v350, %v349
    %v407 = vpack.c.b16 %v352, %v351
    %v408 = vpack.c.b16 %v354, %v353
    %v409 = vpack.c.b16 %v356, %v355
    %v410 = vpack.c.b16 %v358, %v357
    %v411 = vpack.c.b16 %v360, %v359
    %v412 = vpack.c.b16 %v362, %v361
    %v413 = vpack.c.b16 %v364, %v363
    %vm463 = vcmask 130048
    %v465 = vsel %vm463, %v66, 0
    %467 = vmatpush.bf16.msra.mxu0 %v372
    %468 = vmatpush.bf16.msra.mxu0 %v371
    %469 = vmatpush.bf16.msra.mxu0 %v370
    %470 = vmatpush.bf16.msra.mxu0 %v369
    %471 = vmatpush.bf16.msra.mxu0 %v368
    %472 = vmatpush.bf16.msra.mxu0 %v367
    %473 = vmatpush.bf16.msra.mxu0 %v366
    %474 = vmatpush.bf16.msra.mxu0 %v365
    %475 = vmatmul.bf16.gmra.mxu0 %v60
    %v476 = vpop.f32.mrf.mxu0
    %v477 = vadd.f32 %v167, %v476
    %v478 = vpop.f32.mrf.mxu0
    %479 = vdwg.mxu0
    %480 = vmatpush.bf16.msra.mxu0 %v380
    %481 = vmatpush.bf16.msra.mxu0 %v379
    %482 = vmatpush.bf16.msra.mxu0 %v378
    %483 = vmatpush.bf16.msra.mxu0 %v377
    %484 = vmatpush.bf16.msra.mxu0 %v376
    %485 = vmatpush.bf16.msra.mxu0 %v375
    %486 = vmatpush.bf16.msra.mxu0 %v374
    %487 = vmatpush.bf16.msra.mxu0 %v373
    %488 = vmatmul.bf16.gmra.mxu0 %v61
    %v489 = vpop.f32.mrf.mxu0
    %v490 = vadd.f32 %v477, %v489
    %v491 = vpop.f32.mrf.mxu0
    %492 = vdwg.mxu0
    %493 = vmatpush.bf16.msra.mxu0 %v388
    %494 = vmatpush.bf16.msra.mxu0 %v387
    %495 = vmatpush.bf16.msra.mxu0 %v386
    %496 = vmatpush.bf16.msra.mxu0 %v385
    %497 = vmatpush.bf16.msra.mxu0 %v384
    %498 = vmatpush.bf16.msra.mxu0 %v383
    %499 = vmatpush.bf16.msra.mxu0 %v382
    %500 = vmatpush.bf16.msra.mxu0 %v381
    %501 = vmatmul.bf16.gmra.mxu0 %v62
    %v502 = vpop.f32.mrf.mxu0
    %v503 = vadd.f32 %v490, %v502
    %v504 = vpop.f32.mrf.mxu0
    %505 = vdwg.mxu0
    %506 = vmatpush.bf16.msra.mxu0 %v396
    %507 = vmatpush.bf16.msra.mxu0 %v395
    %508 = vmatpush.bf16.msra.mxu0 %v394
    %509 = vmatpush.bf16.msra.mxu0 %v393
    %510 = vmatpush.bf16.msra.mxu0 %v392
    %511 = vmatpush.bf16.msra.mxu0 %v391
    %512 = vmatpush.bf16.msra.mxu0 %v390
    %513 = vmatpush.bf16.msra.mxu0 %v389
    %514 = vmatmul.bf16.gmra.mxu0 %v63
    %v515 = vpop.f32.mrf.mxu0
    %v516 = vadd.f32 %v503, %v515
    %v517 = vpop.f32.mrf.mxu0
    %518 = vdwg.mxu0
    %519 = vmatpush.bf16.msra.mxu0 %v404
    %520 = vmatpush.bf16.msra.mxu0 %v403
    %521 = vmatpush.bf16.msra.mxu0 %v402
    %522 = vmatpush.bf16.msra.mxu0 %v401
    %523 = vmatpush.bf16.msra.mxu0 %v400
    %524 = vmatpush.bf16.msra.mxu0 %v399
    %525 = vmatpush.bf16.msra.mxu0 %v398
    %526 = vmatpush.bf16.msra.mxu0 %v397
    %527 = vmatmul.bf16.gmra.mxu0 %v64
    %v528 = vpop.f32.mrf.mxu0
    %v529 = vadd.f32 %v516, %v528
    %v530 = vpop.f32.mrf.mxu0
    %531 = vdwg.mxu0
    %532 = vmatpush.bf16.msra.mxu0 %v412
    %533 = vmatpush.bf16.msra.mxu0 %v411
    %534 = vmatpush.bf16.msra.mxu0 %v410
    %535 = vmatpush.bf16.msra.mxu0 %v409
    %536 = vmatpush.bf16.msra.mxu0 %v408
    %537 = vmatpush.bf16.msra.mxu0 %v407
    %538 = vmatpush.bf16.msra.mxu0 %v406
    %539 = vmatpush.bf16.msra.mxu0 %v405
    %540 = vmatmul.bf16.gmra.mxu0 %v65
    %v541 = vpop.f32.mrf.mxu0
    %v542 = vadd.f32 %v529, %v541
    %v543 = vpop.f32.mrf.mxu0
    %544 = vdwg.mxu0
    %545 = vmatpush.bf16.msra.mxu0 0
    %546 = vmatpush.bf16.msra.mxu0 0
    %547 = vmatpush.bf16.msra.mxu0 0
    %548 = vmatpush.bf16.msra.mxu0 0
    %549 = vmatpush.bf16.msra.mxu0 0
    %550 = vmatpush.bf16.msra.mxu0 0
    %551 = vmatpush.bf16.msra.mxu0 0
    %552 = vmatpush.bf16.msra.mxu0 %v413
    %553 = vmatmul.bf16.gmra.mxu0 %v465
    %v554 = vpop.f32.mrf.mxu0
    %v555 = vadd.f32 %v542, %v554
    %v556 = vpop.f32.mrf.mxu0
    %557 = vdwg.mxu0
    %vm558 = vcmp.gt.f32.partialorder %v555, 0.0
    %v559 = vmul.f32 %v555, 0.2
    %v560 = vsel %vm558, %v555, %v559
    %v561 = vld [vmem:[%s3] sm:$0x1]
    %s562 = sld [smem:[#allocation2]]
    %v563 = vstv %s562
    %564 = vmatpush.xpose.msra.mxu0 0.0
    %565 = vmatpush.xpose.msra.mxu0 0.0
    %566 = vmatpush.xpose.msra.mxu0 0.0
    %567 = vmatpush.xpose.msra.mxu0 0.0
    %568 = vmatpush.xpose.msra.mxu0 0.0
    %569 = vmatpush.xpose.msra.mxu0 0.0
    %570 = vmatpush.xpose.msra.mxu0 0.0
    %571 = vmatpush.xpose.msra.mxu0 0.0
    %572 = vmatpush.xpose.msra.mxu0 0.0
    %573 = vmatpush.xpose.msra.mxu0 0.0
    %574 = vmatpush.xpose.msra.mxu0 0.0
    %575 = vmatpush.xpose.msra.mxu0 0.0
    %576 = vmatpush.xpose.msra.mxu0 0.0
    %577 = vmatpush.xpose.msra.mxu0 0.0
    %578 = vmatpush.xpose.msra.mxu0 0.0
    %579 = vmatpush.xpose.msra.mxu0 %v560
    %580 = vmatmul.f32.gmra.mxu0 %v561
    %v581 = vpop.f32.mrf.mxu0
    %v582 = vadd.f32 %v563, %v581
    %583 = vdwg.mxu0
    %v584 = vsub.f32 0.0, %v582
    %v585 = vmul.f32 %v584, 1.442695
    %v586 = vpow.pop %v585
    %v587 = vadd.f32 %v586, 1.0
    %v588 = vrcp.pop %v587
    %vm589 = vcmask 57344
    %590 = vst.msk [vmem:[#allocation8] sm:$0x1] %vm589, %v588
    // Predicated region
    $region30: #{tpu_custom_call.1} parent=1 // pred_check
      _
    $region31: #{tpu_custom_call.1} parent=1 // pred_check_branch
      %592 = sbr.rel (0) target = $region33
    $region32: #{tpu_custom_call.1} parent=1 // pred_region
      %594 = vsyncadd [#allocation5], 0
      %s596 = sshll.u32 [#allocation8], 4
      %s597 = int_to_ptr.vmem [resolvable:$true] %s596
      %s598 = sshll.u32 %s5, 4
      %s599 = int_to_ptr.hbm [resolvable:$true] %s598
      %601 = dma.vmem_to_hbm [thread:$0]  %s597, 16, %s599, [#allocation5]
    $region33: #{tpu_custom_call.1} parent=1 // pred_fallthru
      _
    // Predicated region
    $region34: #{tpu_custom_call.1} parent=1 // pred_check
      _
    $region35: #{tpu_custom_call.1} parent=1 // pred_check_branch
      %603 = sbr.rel (0) target = $region37
    $region36: #{tpu_custom_call.1} parent=1 // pred_region
      %605 = dma.done [#allocation5], 16
    $region37: #{tpu_custom_call.1} parent=1 // pred_fallthru
      _
    %606 = vsyncpa [#allocation4], 1
    %607 = vsyncpa [#allocation7], 1
    %608 = vsyncpa [#allocation5], 1

</llo_original>
